<compile_context>
chip_gen: v6e
topology: v6e:2x2x1
jax: 0.10.0
libtpu: 0.0.40
codegen_flags: <defaults>
</compile_context>

<pallas_src>
import functools

import jax
import jax.numpy as jnp
from jax import lax
from jax.experimental import pallas as pl
from jax.experimental.pallas import tpu as pltpu

IGNORED_LOGITS_VALUE = -3000.0
PARAM_PAD = 128  # params occupy lanes [K : K+3] of the packed input


def _sampler_kernel(packed_ref, idx_ref, out_ref):
    """Top-k mask, temperature, softmax, MXU triangular-matmul cumsum, top-p
    prefix, algebraic renormalization, deterministic multinomial, lane gather.

    packed_ref: (B, K + PARAM_PAD) f32
        lanes [0:K]      sorted (descending) top-K logits
        lane  K          top_k      (per row)
        lane  K+1        top_p      (per row)
        lane  K+2        temperature(per row)
    idx_ref:    (B, K) int32  vocabulary indices of the sorted logits
    out_ref:    (B, 1) int32  sampled token id per row
    """
    B, K = idx_ref.shape
    f32 = jnp.float32

    sorted_logits = packed_ref[:, 0:K].astype(f32)          # (B, K) descending
    top_k = packed_ref[:, K:K + 1].astype(jnp.int32)        # (B, 1) int32
    top_p = packed_ref[:, K + 1:K + 2].astype(f32)          # (B, 1)
    temperature = packed_ref[:, K + 2:K + 3].astype(f32)    # (B, 1)
    sorted_idx = idx_ref[...]                                # (B, K) int32

    # Single int32 lane iota, reused for top-k mask, index_fill guard, gather.
    col = lax.broadcasted_iota(jnp.int32, (B, K), 1)

    # ---- _top_k_masked: positions >= top_k -> IGNORED_LOGITS_VALUE
    #      (int32 compare; top_k is integer-valued so truncation is exact).
    logits = jnp.where(col >= top_k, IGNORED_LOGITS_VALUE, sorted_logits)

    # ---- temperature scaling (dynamic=True -> always applied)
    logits = logits / temperature

    # ---- single softmax (the reference's 2nd softmax is folded away below)
    m = jnp.max(logits, axis=-1, keepdims=True)
    e = jnp.exp(logits - m)
    z = jnp.sum(e, axis=-1, keepdims=True)
    probs = e / z                                            # masked lanes -> 0

    # ---- cumsum along lanes: one MXU matmul against a K x K upper-triangular
    #      ones matrix (built in-register from two iotas; 64 KiB f32 at K=128).
    rK = lax.broadcasted_iota(jnp.int32, (K, K), 0)
    cK = lax.broadcasted_iota(jnp.int32, (K, K), 1)
    tri = (rK <= cK).astype(f32)                             # tri[t, i] = t <= i
    cum = jnp.dot(probs, tri, preferred_element_type=f32)    # (B, K) non-decreasing

    # ---- top-p cutoff. torch.max(torch.min(probs_cumsum), top_p): the global
    #      min of per-row non-decreasing cumsums is min over column 0, and
    #      cum[:, 0] == probs[:, 0].
    gmin = jnp.min(probs[:, 0:1], axis=0, keepdims=True)     # (1, 1)
    top_p_eff = jnp.maximum(gmin, top_p)                     # (B, 1)
    # index_fill_(dim, [0], False): never mask the first (largest) token.
    top_p_mask = jnp.logical_and(cum > top_p_eff, col != 0)

    # ---- fold the reference's 2nd softmax + 2nd cumsum: survivors are a
    #      prefix, so the renormalized cumsum is cum / S with S the surviving
    #      probability mass (masked logits at -3000 underflow to prob 0).
    surv = jnp.sum(jnp.where(top_p_mask, 0.0, probs), axis=-1, keepdims=True)

    # ---- deterministic multinomial: rand_selector = 0.5
    #      counts = #(0.5 > cum/S) == #(0.5*S > cum)
    # TODO(synk): non-deterministic path (rand_like) would use pltpu.prng_seed
    #             + pltpu.prng_random_bits; deterministic=True assumed here.
    counts = jnp.sum((0.5 * surv > cum).astype(jnp.int32),
                     axis=-1, keepdims=True)                 # (B, 1) int32

    # ---- torch.gather(sorted_idx, -1, counts) as a masked lane reduce.
    # TODO(synk): a lane-dense (1, B) output would avoid a masked vst; the
    #             sublane->lane relayout is not worth the risk at this size.
    out_ref[...] = jnp.sum(jnp.where(col == counts, sorted_idx, 0),
                           axis=-1, keepdims=True)


@functools.partial(jax.jit, static_argnames=("k_max",))
def sampler_forward(token_logits, sampling_params, k_max=128):
    """Equivalent of Sampler.forward (do_sample=True, dynamic, deterministic).

    k_max must be >= the largest runtime top_k; under that condition the
    static top-k_max window is exact (everything past top_k is masked anyway).
    temperature == 0 (greedy) and top_k == 0 must be guarded upstream, as in
    the reference.
    """
    B, V = token_logits.shape
    k = min(int(k_max), V)

    # TODO(synk): sort/top_k has no clean Mosaic lowering; this full-vocab
    # lax.top_k is the only O(V) HBM read and the real bottleneck at large V.
    # A tiled Pallas candidate-selection pre-pass would stream logits once.
    topk_vals, topk_idx = lax.top_k(token_logits, k)          # (B, k), (B, k)

    # Pack per-row (top_k, top_p, temperature) into the tail lanes of the
    # logits transfer: one VMEM input DMA instead of two, lane-padded so the
    # packed block stays a clean multiple of 128 wide.
    params = sampling_params.astype(jnp.float32)              # (B, 3)
    pad = jnp.zeros((B, PARAM_PAD - 3), jnp.float32)
    packed = jnp.concatenate(
        [topk_vals.astype(jnp.float32), params, pad], axis=1)  # (B, k+PARAM_PAD)

    out = pl.pallas_call(
        _sampler_kernel,
        out_shape=jax.ShapeDtypeStruct((B, 1), jnp.int32),
        grid=(1,),
        in_specs=[
            pl.BlockSpec((B, k + PARAM_PAD), lambda i: (0, 0)),
            pl.BlockSpec((B, k), lambda i: (0, 0)),
        ],
        out_specs=pl.BlockSpec((B, 1), lambda i: (0, 0)),
        compiler_params=pltpu.CompilerParams(
            dimension_semantics=("arbitrary",)),
    )(packed, topk_idx.astype(jnp.int32))

    # torch returns gather(...).flatten() -> shape (B,)
    return out.reshape(-1)


def _sampler_reference(token_logits, sampling_params):
    """Pure-JAX transcription of the torch Sampler.forward sampling path."""
    B, V = token_logits.shape
    logits = token_logits.astype(jnp.float32)
    top_k = sampling_params[:, 0:1].astype(jnp.float32)
    top_p = sampling_params[:, 1:2].astype(jnp.float32)
    temperature = sampling_params[:, 2:3].astype(jnp.float32)

    order = jnp.argsort(-logits, axis=-1).astype(jnp.int32)
    sorted_logits = jnp.take_along_axis(logits, order, axis=-1)
    col = jnp.arange(V, dtype=jnp.float32)[None, :]
    sorted_logits = jnp.where(col >= top_k, IGNORED_LOGITS_VALUE, sorted_logits)
    sorted_logits = sorted_logits / temperature
    probs = jax.nn.softmax(sorted_logits, axis=-1)
    cum = jnp.cumsum(probs, axis=-1)
    top_p_eff = jnp.maximum(jnp.min(cum), top_p)
    mask = jnp.logical_and(cum > top_p_eff, col != 0.0)
    sorted_logits = jnp.where(mask, IGNORED_LOGITS_VALUE, sorted_logits)
    probs = jax.nn.softmax(sorted_logits, axis=-1)
    cum = jnp.cumsum(probs, axis=-1)
    counts = jnp.sum((0.5 > cum).astype(jnp.int32), axis=-1, keepdims=True)
    return jnp.take_along_axis(order, counts, axis=-1).reshape(-1)


if __name__ == "__main__":
    key = jax.random.PRNGKey(0)
    B, V, K_MAX = 2, 512, 128

    token_logits = jax.random.normal(key, (B, V), dtype=jnp.float32) * 3.0

    # sampling_params[:, 0]=top_k, [:, 1]=top_p, [:, 2]=temperature
    sampling_params = jnp.array(
        [[8.0, 0.90, 1.0],
         [16.0, 0.70, 0.8]], dtype=jnp.float32)

    tokens = sampler_forward(token_logits, sampling_params, k_max=K_MAX)
    jax.block_until_ready(tokens)

    assert tokens.shape == (B,) and tokens.dtype == jnp.int32
    assert bool(jnp.all(tokens >= 0)) and bool(jnp.all(tokens < V))

    ref_tokens = _sampler_reference(token_logits, sampling_params)
    assert bool(jnp.array_equal(tokens, ref_tokens.astype(jnp.int32))), (
        tokens, ref_tokens)

    print("KERNEL_OK")
</pallas_src>

<mosaic_0001>
module attributes {stable_mosaic.version = 11 : i64} {
  func.func @_sampler_kernel(%arg0: i32, %arg1: memref<2x256xf32, #tpu.memory_space<vmem>>, %arg2: memref<2x128xi32, #tpu.memory_space<vmem>>, %arg3: memref<2x1xi32, #tpu.memory_space<vmem>>) attributes {dimension_semantics = [#tpu.dimension_semantics<arbitrary>], iteration_bounds = array<i64: 1>, scalar_prefetch = 0 : i64, scratch_operands = 0 : i64, tpu.core_type = #tpu.core_type<tc>, window_params = [{pipeline_mode = #tpu.pipeline_mode<synchronous>, transform_indices = @transform_0, window_bounds = array<i64: 2, 256>}, {pipeline_mode = #tpu.pipeline_mode<synchronous>, transform_indices = @transform_1, window_bounds = array<i64: 2, 128>}, {pipeline_mode = #tpu.pipeline_mode<synchronous>, transform_indices = @transform_2, window_bounds = array<i64: 2, 1>}]} {
    %c0 = arith.constant 0 : index
    %c0_0 = arith.constant 0 : index
    %0 = vector.load %arg1[%c0, %c0_0] : memref<2x256xf32, #tpu.memory_space<vmem>>, vector<2x128xf32>
    %c0_1 = arith.constant 0 : index
    %c128 = arith.constant 128 : index
    %1 = vector.load %arg1[%c0_1, %c128] : memref<2x256xf32, #tpu.memory_space<vmem>>, vector<2x1xf32>
    %2 = arith.fptosi %1 : vector<2x1xf32> to vector<2x1xi32>
    %c0_2 = arith.constant 0 : index
    %c129 = arith.constant 129 : index
    %3 = vector.load %arg1[%c0_2, %c129] : memref<2x256xf32, #tpu.memory_space<vmem>>, vector<2x1xf32>
    %c0_3 = arith.constant 0 : index
    %c130 = arith.constant 130 : index
    %4 = vector.load %arg1[%c0_3, %c130] : memref<2x256xf32, #tpu.memory_space<vmem>>, vector<2x1xf32>
    %c0_4 = arith.constant 0 : index
    %c0_5 = arith.constant 0 : index
    %5 = vector.load %arg2[%c0_4, %c0_5] : memref<2x128xi32, #tpu.memory_space<vmem>>, vector<2x128xi32>
    %6 = tpu.iota {dimensions = array<i32: 1>} : vector<2x128xi32>
    %7 = vector.broadcast %2 : vector<2x1xi32> to vector<2x128xi32>
    %8 = arith.cmpi sge, %6, %7 : vector<2x128xi32>
    %cst = arith.constant -3.000000e+03 : f32
    %9 = vector.broadcast %cst : f32 to vector<2x128xf32>
    %10 = arith.select %8, %9, %0 : vector<2x128xi1>, vector<2x128xf32>
    %11 = vector.broadcast %4 : vector<2x1xf32> to vector<2x128xf32>
    %12 = arith.divf %10, %11 : vector<2x128xf32>
    %cst_6 = arith.constant dense<0xFF800000> : vector<2xf32>
    %13 = vector.multi_reduction <maximumf>, %12, %cst_6 [1] : vector<2x128xf32> to vector<2xf32>
    %14 = vector.shape_cast %13 : vector<2xf32> to vector<2x1xf32>
    %15 = vector.broadcast %14 : vector<2x1xf32> to vector<2x128xf32>
    %16 = arith.subf %12, %15 : vector<2x128xf32>
    %17 = math.exp %16 : vector<2x128xf32>
    %cst_7 = arith.constant dense<0.000000e+00> : vector<2xf32>
    %18 = vector.multi_reduction <add>, %17, %cst_7 [1] : vector<2x128xf32> to vector<2xf32>
    %19 = vector.shape_cast %18 : vector<2xf32> to vector<2x1xf32>
    %20 = vector.broadcast %19 : vector<2x1xf32> to vector<2x128xf32>
    %21 = arith.divf %17, %20 : vector<2x128xf32>
    %22 = tpu.iota {dimensions = array<i32: 0>} : vector<128x128xi32>
    %23 = tpu.iota {dimensions = array<i32: 1>} : vector<128x128xi32>
    %24 = arith.cmpi sle, %22, %23 : vector<128x128xi32>
    %25 = arith.extui %24 : vector<128x128xi1> to vector<128x128xi32>
    %26 = arith.sitofp %25 : vector<128x128xi32> to vector<128x128xf32>
    %cst_8 = arith.constant dense<0.000000e+00> : vector<2x128xf32>
    %27 = tpu.matmul %21, %26, %cst_8 {dimension_numbers = #tpu.dot_dimension_numbers<[1], [0], [0], [1], [0, 0, 1, 1], [], []>} : vector<2x128xf32>, vector<128x128xf32>, vector<2x128xf32> -> vector<2x128xf32>
    %28 = vector.extract_strided_slice %21 {offsets = [0, 0], sizes = [2, 1], strides = [1, 1]} : vector<2x128xf32> to vector<2x1xf32>
    %cst_9 = arith.constant dense<0x7F800000> : vector<1xf32>
    %29 = vector.multi_reduction <minimumf>, %28, %cst_9 [0] : vector<2x1xf32> to vector<1xf32>
    %30 = vector.shape_cast %29 : vector<1xf32> to vector<1x1xf32>
    %31 = vector.broadcast %30 : vector<1x1xf32> to vector<2x1xf32>
    %32 = arith.maximumf %31, %3 : vector<2x1xf32>
    %33 = vector.broadcast %32 : vector<2x1xf32> to vector<2x128xf32>
    %34 = arith.cmpf ogt, %27, %33 : vector<2x128xf32>
    %c0_i32 = arith.constant 0 : i32
    %35 = vector.broadcast %c0_i32 : i32 to vector<2x128xi32>
    %36 = arith.cmpi ne, %6, %35 : vector<2x128xi32>
    %37 = arith.andi %34, %36 : vector<2x128xi1>
    %cst_10 = arith.constant 0.000000e+00 : f32
    %38 = vector.broadcast %cst_10 : f32 to vector<2x128xf32>
    %39 = arith.select %37, %38, %21 : vector<2x128xi1>, vector<2x128xf32>
    %cst_11 = arith.constant dense<0.000000e+00> : vector<2xf32>
    %40 = vector.multi_reduction <add>, %39, %cst_11 [1] : vector<2x128xf32> to vector<2xf32>
    %41 = vector.shape_cast %40 : vector<2xf32> to vector<2x1xf32>
    %cst_12 = arith.constant 5.000000e-01 : f32
    %42 = vector.broadcast %cst_12 : f32 to vector<2x1xf32>
    %43 = arith.mulf %42, %41 : vector<2x1xf32>
    %44 = vector.broadcast %43 : vector<2x1xf32> to vector<2x128xf32>
    %45 = arith.cmpf ogt, %44, %27 : vector<2x128xf32>
    %46 = arith.extui %45 : vector<2x128xi1> to vector<2x128xi32>
    %cst_13 = arith.constant dense<0> : vector<2xi32>
    %47 = vector.multi_reduction <add>, %46, %cst_13 [1] : vector<2x128xi32> to vector<2xi32>
    %48 = vector.shape_cast %47 : vector<2xi32> to vector<2x1xi32>
    %49 = vector.broadcast %48 : vector<2x1xi32> to vector<2x128xi32>
    %50 = arith.cmpi eq, %6, %49 : vector<2x128xi32>
    %c0_i32_14 = arith.constant 0 : i32
    %51 = vector.broadcast %c0_i32_14 : i32 to vector<2x128xi32>
    %52 = arith.select %50, %5, %51 : vector<2x128xi1>, vector<2x128xi32>
    %cst_15 = arith.constant dense<0> : vector<2xi32>
    %53 = vector.multi_reduction <add>, %52, %cst_15 [1] : vector<2x128xi32> to vector<2xi32>
    %54 = vector.shape_cast %53 : vector<2xi32> to vector<2x1xi32>
    %c0_16 = arith.constant 0 : index
    %c0_17 = arith.constant 0 : index
    %55 = vector.load %arg3[%c0_16, %c0_17] : memref<2x1xi32, #tpu.memory_space<vmem>>, vector<2x1xi32>
    tpu.vector_store %arg3[%c0_16, %c0_17], %54 {strides = array<i32>} : memref<2x1xi32, #tpu.memory_space<vmem>>, vector<2x1xi32>,
    return
  }
  func.func @transform_0(%arg0: i32) -> (i32, i32) {
    %c0_i32 = arith.constant 0 : i32
    %c0_i32_0 = arith.constant 0 : i32
    %c0_i32_1 = arith.constant 0 : i32
    return %c0_i32, %c0_i32_0 : i32, i32
  }
  func.func @transform_1(%arg0: i32) -> (i32, i32) {
    %c0_i32 = arith.constant 0 : i32
    %c0_i32_0 = arith.constant 0 : i32
    %c0_i32_1 = arith.constant 0 : i32
    return %c0_i32, %c0_i32_0 : i32, i32
  }
  func.func @transform_2(%arg0: i32) -> (i32, i32) {
    %c0_i32 = arith.constant 0 : i32
    %c0_i32_0 = arith.constant 0 : i32
    %c0_i32_1 = arith.constant 0 : i32
    return %c0_i32, %c0_i32_0 : i32, i32
  }
}

</mosaic_0001>

<llo_original>
// kernel: sampler_forward.1
$region0: #{sampler_forward.1}
  #allocation0 [shape = 'u32[]', space=smem, size = 0x4, offset = 0x4, fixed_abs, tag = 'smem constant byte address 0x4 - core index']
  #allocation1 [shape = 'u32[144,128]{1,0:T(1,128)}', space=vmem, size = 0x12000, scoped, tag = 'internal scratch']
  %s0 = inlined_call_operand.vmem [shape: f32[2,256], index: 0, kind: input, shape index: {}]
  %s1 = inlined_call_operand.vmem [shape: s32[2,128], index: 1, kind: input, shape index: {}]
  %s2 = inlined_call_operand.vmem [shape: s32[2,1], index: 2, kind: output, shape index: {}]
  %s3 = sld [smem:[#allocation0]]
  $region18: #{sampler_forward.1} parent=0
    _
  %s5 = ssub.s32 1, %s3
  %s6 = scalar_select 0, %s5, %s3
  // Predicated region
  $region2: #{sampler_forward.1} parent=0 // pred_check
    _
  $region3: #{sampler_forward.1} parent=0 // pred_check_branch
    %8 = sbr.rel (0) target = $region5
  $region4: #{sampler_forward.1} parent=0 // pred_region
    _
  $region5: #{sampler_forward.1} parent=0 // pred_fallthru
    _
  // Predicated region
  $region6: #{sampler_forward.1} parent=0 // pred_check
    _
  $region7: #{sampler_forward.1} parent=0 // pred_check_branch
    %10 = sbr.rel (0) target = $region9
  $region8: #{sampler_forward.1} parent=0 // pred_region
    _
  $region9: #{sampler_forward.1} parent=0 // pred_fallthru
    _
  %v11 = vld [vmem:[%s0] sm:$0x3]
  %v12 = vld [vmem:[%s0 + $0x2] sm:$0x3]
  %v13 = vcvt.f32.s32.to.zero.pseudo %v12
  %v14 = vld [vmem:[%s1] sm:$0x3]
  %v15 = vlaneseq
  %v16 = vand.u32 %v15, 127
  %17 = vset.pattern.permute.xlu0 0
  %18 = vperm.xlu0 %17, %v13
  %v19 = vpop.permute.xlu0 %18
  %v21 = vunpack.c.l.s4 269488144
  %v22 = vunpack.c.0.s8 %v21
  %v23 = vlaneseq
  %v24 = vshrl.u32 %v23, 7
  %v25 = vsub.s32 %v22, %v24
  %v26 = vrot.slane %v19, %v25
  %vm27 = vcmp.ge.s32.totalorder %v16, %v26
  %v28 = vsel %vm27, -3000.0, %v11
  %30 = vset.pattern.permute.xlu0 2
  %31 = vperm.xlu0 %30, %v12
  %v32 = vpop.permute.xlu0 %31
  %v35 = vunpack.c.l.s4 269488144
  %v36 = vunpack.c.0.s8 %v35
  %v37 = vlaneseq
  %v38 = vshrl.u32 %v37, 7
  %v39 = vsub.s32 %v36, %v38
  %v40 = vrot.slane %v32, %v39
  %v41 = vrcp.pop %v40
  %v42 = vmul.f32 %v28, %v41
  %vm43 = vcmask 1041408
  %v44 = vsel %vm43, %v42, -inf
  %45 = vmax.xlane.f32.xlu0 %v44
  %v46 = vpop.xlane.xlu0 %45
  %v47 = vsub.f32 %v42, %v46
  %v48 = vmul.f32 %v47, 1.442695
  %v49 = vpow.pop %v48
  %v50 = vsel %vm43, %v49, 0.0
  %51 = vadd.xlane.f32.xlu0 %v50
  %v52 = vpop.xlane.xlu0 %51
  %v53 = vrcp.pop %v52
  %v54 = vmul.f32 %v49, %v53
  %v55 = vlaneseq
  %v56 = vshrl.u32 %v55, 7
  %v57 = vadd.s32 %v56, 8
  %v58 = vadd.s32 %v56, 16
  %v59 = vadd.s32 %v56, 24
  %v60 = vadd.s32 %v56, 32
  %v61 = vadd.s32 %v56, 40
  %v62 = vadd.s32 %v56, 48
  %v63 = vadd.s32 %v56, 56
  %v64 = vadd.s32 %v56, 64
  %v65 = vadd.s32 %v56, 72
  %v66 = vadd.s32 %v56, 80
  %v67 = vadd.s32 %v56, 88
  %v68 = vadd.s32 %v56, 96
  %v69 = vadd.s32 %v56, 104
  %v70 = vadd.s32 %v56, 112
  %v71 = vadd.s32 %v56, 120
  %vm72 = vcmp.le.s32.totalorder %v56, %v16
  %vm73 = vcmp.le.s32.totalorder %v57, %v16
  %vm74 = vcmp.le.s32.totalorder %v58, %v16
  %vm75 = vcmp.le.s32.totalorder %v59, %v16
  %vm76 = vcmp.le.s32.totalorder %v60, %v16
  %vm77 = vcmp.le.s32.totalorder %v61, %v16
  %vm78 = vcmp.le.s32.totalorder %v62, %v16
  %vm79 = vcmp.le.s32.totalorder %v63, %v16
  %vm80 = vcmp.le.s32.totalorder %v64, %v16
  %vm81 = vcmp.le.s32.totalorder %v65, %v16
  %vm82 = vcmp.le.s32.totalorder %v66, %v16
  %vm83 = vcmp.le.s32.totalorder %v67, %v16
  %vm84 = vcmp.le.s32.totalorder %v68, %v16
  %vm85 = vcmp.le.s32.totalorder %v69, %v16
  %vm86 = vcmp.le.s32.totalorder %v70, %v16
  %vm87 = vcmp.le.s32.totalorder %v71, %v16
  %v88 = vsel %vm72, 1, 0
  %v89 = vsel %vm73, 1, 0
  %v90 = vsel %vm74, 1, 0
  %v91 = vsel %vm75, 1, 0
  %v92 = vsel %vm76, 1, 0
  %v93 = vsel %vm77, 1, 0
  %v94 = vsel %vm78, 1, 0
  %v95 = vsel %vm79, 1, 0
  %v96 = vsel %vm80, 1, 0
  %v97 = vsel %vm81, 1, 0
  %v98 = vsel %vm82, 1, 0
  %v99 = vsel %vm83, 1, 0
  %v100 = vsel %vm84, 1, 0
  %v101 = vsel %vm85, 1, 0
  %v102 = vsel %vm86, 1, 0
  %v103 = vsel %vm87, 1, 0
  %v104 = vcvt.s32.f32 %v88
  %v105 = vcvt.s32.f32 %v89
  %v106 = vcvt.s32.f32 %v90
  %v107 = vcvt.s32.f32 %v91
  %v108 = vcvt.s32.f32 %v92
  %v109 = vcvt.s32.f32 %v93
  %v110 = vcvt.s32.f32 %v94
  %v111 = vcvt.s32.f32 %v95
  %v112 = vcvt.s32.f32 %v96
  %v113 = vcvt.s32.f32 %v97
  %v114 = vcvt.s32.f32 %v98
  %v115 = vcvt.s32.f32 %v99
  %v116 = vcvt.s32.f32 %v100
  %v117 = vcvt.s32.f32 %v101
  %v118 = vcvt.s32.f32 %v102
  %v119 = vcvt.s32.f32 %v103
  %120 = vmatprep.subr.mxu0 0.0
  %121 = vmatpush1.msra.mxu0 %v119
  %122 = vmatprep.subr.mxu0 0.0
  %123 = vmatpush1.msra.mxu0 %v118
  %124 = vmatprep.subr.mxu0 0.0
  %125 = vmatpush1.msra.mxu0 %v117
  %126 = vmatprep.subr.mxu0 0.0
  %127 = vmatpush1.msra.mxu0 %v116
  %128 = vmatprep.subr.mxu0 0.0
  %129 = vmatpush1.msra.mxu0 %v115
  %130 = vmatprep.subr.mxu0 0.0
  %131 = vmatpush1.msra.mxu0 %v114
  %132 = vmatprep.subr.mxu0 0.0
  %133 = vmatpush1.msra.mxu0 %v113
  %134 = vmatprep.subr.mxu0 0.0
  %135 = vmatpush1.msra.mxu0 %v112
  %136 = vmatprep.subr.mxu0 0.0
  %137 = vmatpush1.msra.mxu0 %v111
  %138 = vmatprep.subr.mxu0 0.0
  %139 = vmatpush1.msra.mxu0 %v110
  %140 = vmatprep.subr.mxu0 0.0
  %141 = vmatpush1.msra.mxu0 %v109
  %142 = vmatprep.subr.mxu0 0.0
  %143 = vmatpush1.msra.mxu0 %v108
  %144 = vmatprep.subr.mxu0 0.0
  %145 = vmatpush1.msra.mxu0 %v107
  %146 = vmatprep.subr.mxu0 0.0
  %147 = vmatpush1.msra.mxu0 %v106
  %148 = vmatprep.subr.mxu0 0.0
  %149 = vmatpush1.msra.mxu0 %v105
  %150 = vmatprep.subr.mxu0 0.0
  %151 = vmatpush1.msra.mxu0 %v104
  %152 = vmatprep.subr.mxu0 0.0
  %153 = vmatpush2.msra.mxu0 0.0
  %154 = vmatprep.subr.mxu0 0.0
  %155 = vmatpush2.msra.mxu0 0.0
  %156 = vmatprep.subr.mxu0 0.0
  %157 = vmatpush2.msra.mxu0 0.0
  %158 = vmatprep.subr.mxu0 0.0
  %159 = vmatpush2.msra.mxu0 0.0
  %160 = vmatprep.subr.mxu0 0.0
  %161 = vmatpush2.msra.mxu0 0.0
  %162 = vmatprep.subr.mxu0 0.0
  %163 = vmatpush2.msra.mxu0 0.0
  %164 = vmatprep.subr.mxu0 0.0
  %165 = vmatpush2.msra.mxu0 0.0
  %166 = vmatprep.subr.mxu0 0.0
  %167 = vmatpush2.msra.mxu0 0.0
  %168 = vmatprep.subr.mxu0 0.0
  %169 = vmatpush2.msra.mxu0 0.0
  %170 = vmatprep.subr.mxu0 0.0
  %171 = vmatpush2.msra.mxu0 0.0
  %172 = vmatprep.subr.mxu0 0.0
  %173 = vmatpush2.msra.mxu0 0.0
  %174 = vmatprep.subr.mxu0 0.0
  %175 = vmatpush2.msra.mxu0 0.0
  %176 = vmatprep.subr.mxu0 0.0
  %177 = vmatpush2.msra.mxu0 0.0
  %178 = vmatprep.subr.mxu0 0.0
  %179 = vmatpush2.msra.mxu0 0.0
  %180 = vmatprep.subr.mxu0 0.0
  %181 = vmatpush2.msra.mxu0 0.0
  %182 = vmatprep.subr.mxu0 0.0
  %183 = vmatpush2.msra.mxu0 0.0
  %184 = vmatprep.mubr.f32.mxu0 0.0
  %185 = vmatmul.mubr.f32.gmra.mxu0 %v54
  %v186 = vpop.f32.mrf.mxu0
  %v187 = vadd.f32 0.0, %v186
  %v188 = vpop.f32.mrf.mxu0
  %189 = vdwg.mxu0
  %vm190 = vcmask 1024
  %v191 = vsel %vm190, %v54, inf
  %v192 = vrot.slane %v191, 4
  %v193 = vmin.f32 %v191, %v192
  %v194 = vrot.slane %v193, 2
  %v195 = vmin.f32 %v193, %v194
  %v196 = vrot.slane %v195, 1
  %v197 = vmin.f32 %v195, %v196
  %v199 = vunpack.c.l.s4 1983009808
  %v200 = vunpack.c.0.s8 %v199
  %v201 = vlaneseq
  %v202 = vshrl.u32 %v201, 7
  %v203 = vsub.s32 %v200, %v202
  %v204 = vrot.slane %v12, %v203
  %205 = vrot.lane.b32.xlu0 %v204, 127
  %v206 = vpop.permute.xlu0 %205
  %v208 = vmax.f32 %v197, %v206
  %210 = vset.pattern.permute.xlu0 0
  %211 = vperm.xlu0 %210, %v208
  %v212 = vpop.permute.xlu0 %211
  %vm214 = vcmp.gt.f32.partialorder %v187, %v212
  %vm215 = vcmp.ne.s32.totalorder %v16, 0
  %vm216 = vmand %vm214, %vm215
  %v217 = vsel %vm216, 0.0, %v54
  %v218 = vsel %vm43, %v217, 0.0
  %219 = vadd.xlane.f32.xlu0 %v218
  %v220 = vpop.xlane.xlu0 %219
  %v221 = vmul.f32 %v220, 0.5
  %vm222 = vcmp.gt.f32.partialorder %v221, %v187
  %v223 = vsel %vm222, 1, 0
  %v224 = vsel %vm43, %v223, 0
  %v225 = vand.u32 %v224, 65535
  %v226 = vshrl.u32 %v224, 16
  %v227 = vcvt.s32.f32 %v225
  %v228 = vcvt.s32.f32 %v226
  %229 = vadd.xlane.f32.xlu0 %v227
  %v230 = vpop.xlane.xlu0 %229
  %231 = vadd.xlane.f32.xlu0 %v228
  %v232 = vpop.xlane.xlu0 %231
  %v233 = vcvt.f32.s32 %v230
  %v234 = vcvt.f32.s32 %v232
  %v235 = vshll.u32 %v234, 16
  %v236 = vadd.s32 %v235, %v233
  %vm237 = vcmp.eq.s32.totalorder %v16, %v236
  %v238 = vsel %vm237, %v14, 0
  %v239 = vsel %vm43, %v238, 0
  %v240 = vand.u32 %v239, 65535
  %v241 = vshrl.u32 %v239, 16
  %v242 = vcvt.s32.f32 %v240
  %v243 = vcvt.s32.f32 %v241
  %244 = vadd.xlane.f32.xlu0 %v242
  %v245 = vpop.xlane.xlu0 %244
  %246 = vadd.xlane.f32.xlu0 %v243
  %v247 = vpop.xlane.xlu0 %246
  %v248 = vcvt.f32.s32 %v245
  %v249 = vcvt.f32.s32 %v247
  %v250 = vshll.u32 %v249, 16
  %v251 = vadd.s32 %v250, %v248
  %252 = vst.msk [vmem:[%s2] sm:$0x3] %vm190, %v251
  // Predicated region
  $region10: #{sampler_forward.1} parent=0 // pred_check
    _
  $region11: #{sampler_forward.1} parent=0 // pred_check_branch
    %254 = sbr.rel (0) target = $region13
  $region12: #{sampler_forward.1} parent=0 // pred_region
    _
  $region13: #{sampler_forward.1} parent=0 // pred_fallthru
    _
  // Predicated region
  $region14: #{sampler_forward.1} parent=0 // pred_check
    _
  $region15: #{sampler_forward.1} parent=0 // pred_check_branch
    %256 = sbr.rel (0) target = $region17
  $region16: #{sampler_forward.1} parent=0 // pred_region
    _
  $region17: #{sampler_forward.1} parent=0 // pred_fallthru
    _

</llo_original>
